<compile_context>
chip_gen: v6e
topology: v6e:2x2x1
jax: 0.10.0
libtpu: 0.0.40
codegen_flags: <defaults>
</compile_context>

<pallas_src>
import jax
import jax.numpy as jnp
from jax.experimental import pallas as pl
from jax.experimental.pallas import tpu as pltpu


# ----------------------------------------------------------------------------
# Kernels
# ----------------------------------------------------------------------------
def _edge_mlp_packed_kernel(x_ref, w_ref, b_ref, o_ref):
    """Lane-dense Linear(R->D, bias) + SoftPlus on packed rows.

    x_ref: [tile, PACK*R]  (PACK edge rows packed per 128-lane row, row-major;
                            f32 or bf16 -- cast to f32 in-kernel, hidden under DMA)
    w_ref: [PACK*R, PACK*D] block-diagonal weight (resident across the grid)
    b_ref: [1, PACK*D]      tiled bias (resident across the grid)
    o_ref: [tile, PACK*D]   bit-identical to the row-major [PACK*tile, D] output
                            (stored in o_ref.dtype, typically bf16)
    """
    x = x_ref[...].astype(jnp.float32)
    y = jnp.dot(x, w_ref[...], preferred_element_type=jnp.float32) + b_ref[...]
    # numerically stable softplus, all f32: max(y,0) + log1p(exp(-|y|))
    sp = jnp.maximum(y, 0.0) + jnp.log1p(jnp.exp(-jnp.abs(y)))
    o_ref[...] = sp.astype(o_ref.dtype)


def _packed_onehot_gather(idx, tbl_bd):
    """Lane-dense embedding gather.

    idx:    [rows, NP] int32   (NP node ids packed per row)
    tbl_bd: [NP*T, NP*D] f32   block-diagonal table, row index = p*T + t
    returns [rows, NP*D] f32 where lanes p*D:(p+1)*D of row r hold table[idx[r,p]].
    """
    rows, npk = idx.shape
    ntypes = tbl_bd.shape[0] // npk
    iota_t = jax.lax.broadcasted_iota(jnp.int32, (rows, ntypes), 1)
    # slot-major one-hot: column c = p*T + t  ->  (idx[r, p] == t)
    oh = jnp.concatenate(
        [(idx[:, p:p + 1] == iota_t).astype(jnp.float32) for p in range(npk)],
        axis=-1)
    return jnp.dot(oh, tbl_bd, preferred_element_type=jnp.float32)


def _node_state_lookup_kernel(nidx_ref, ntbl_ref, sidx_ref, stbl_ref,
                              nout_ref, sout_ref):
    """Gridded, lane-dense node lookup; tiny state lookup folded into step 0."""
    nout_ref[...] = _packed_onehot_gather(nidx_ref[...], ntbl_ref[...])

    @pl.when(pl.program_id(0) == 0)
    def _():
        s = sidx_ref.shape[0]
        ts = stbl_ref.shape[0]
        iota = jax.lax.broadcasted_iota(jnp.int32, (s, ts), 1)
        oh = (sidx_ref[...] == iota).astype(jnp.float32)
        sout_ref[...] = jnp.dot(oh, stbl_ref[...],
                                preferred_element_type=jnp.float32)


def _node_lookup_kernel(nidx_ref, ntbl_ref, nout_ref):
    nout_ref[...] = _packed_onehot_gather(nidx_ref[...], ntbl_ref[...])


# ----------------------------------------------------------------------------
# Wrappers
# ----------------------------------------------------------------------------
def edge_mlp_packed(edge_attr, w_bd, b_bd, dim_edge, *, pack,
                    max_tile_rows=2048, out_dtype=jnp.bfloat16):
    """softplus(edge_attr @ W + b) in a lane-dense packed layout.

    edge_attr: [E, R] (f32 or bf16), w_bd: [pack*R, pack*D] block-diag,
    b_bd: [1, pack*D] -> [E, D] in `out_dtype`.
    """
    assert max_tile_rows % 8 == 0
    e, r = edge_attr.shape
    d = dim_edge

    rows = pl.cdiv(e, pack)
    e_pad = rows * pack
    x = edge_attr
    if e_pad != e:
        # pad only to the pack boundary (<= pack-1 rows); no pad when E % pack == 0
        x = jnp.pad(x, ((0, e_pad - e), (0, 0)))
    x_packed = x.reshape(rows, pack * r)   # contiguous reshape: free, no HBM copy

    # single full-array block for small E; otherwise 8-aligned tiles with a ragged
    # last block handled by Pallas (garbage rows are trimmed in the wrapper).
    tile = rows if rows <= max_tile_rows else max_tile_rows
    grid = pl.cdiv(rows, tile)

    out_packed = pl.pallas_call(
        _edge_mlp_packed_kernel,
        out_shape=jax.ShapeDtypeStruct((rows, pack * d), out_dtype),
        grid_spec=pltpu.PrefetchScalarGridSpec(
            num_scalar_prefetch=0,
            grid=(grid,),
            in_specs=[
                pl.BlockSpec((tile, pack * r), lambda i: (i, 0)),
                pl.BlockSpec((pack * r, pack * d), lambda i: (0, 0)),  # resident W
                pl.BlockSpec((1, pack * d), lambda i: (0, 0)),         # resident b
            ],
            out_specs=pl.BlockSpec((tile, pack * d), lambda i: (i, 0)),
        ),
        compiler_params=pltpu.CompilerParams(
            # shard the mem-bound row grid across both TensorCores on v7x
            dimension_semantics=("parallel",),
        ),
    )(x_packed, w_bd, b_bd)

    # bit-identical unpack back to [E, D]; trim packing-pad rows
    return out_packed.reshape(e_pad, d)[:e]


def node_state_lookup(node_idx, node_tbl_bd, npack, dim_node,
                      state_idx, state_table, *, max_tile_rows=2048):
    """Gridded, lane-dense node lookup + tiny state lookup in ONE pallas_call."""
    assert max_tile_rows % 8 == 0
    n = node_idx.shape[0]
    n_rows = pl.cdiv(n, npack)
    n_pad = n_rows * npack
    nidx = node_idx.astype(jnp.int32)
    if n_pad != n:
        nidx = jnp.pad(nidx, (0, n_pad - n))   # tiny int array, negligible
    nidx = nidx.reshape(n_rows, npack)

    s = state_idx.shape[0]
    ts, ds = state_table.shape
    sidx = state_idx.reshape(s, 1).astype(jnp.int32)

    tile = n_rows if n_rows <= max_tile_rows else max_tile_rows
    grid = pl.cdiv(n_rows, tile)

    packed_out, state_feat = pl.pallas_call(
        _node_state_lookup_kernel,
        out_shape=(jax.ShapeDtypeStruct((n_rows, npack * dim_node), jnp.float32),
                   jax.ShapeDtypeStruct((s, ds), jnp.float32)),
        grid_spec=pltpu.PrefetchScalarGridSpec(
            num_scalar_prefetch=0,
            grid=(grid,),
            in_specs=[
                pl.BlockSpec((tile, npack), lambda i: (i, 0)),
                pl.BlockSpec(node_tbl_bd.shape, lambda i: (0, 0)),   # resident table
                pl.BlockSpec((s, 1), lambda i: (0, 0)),              # resident idx
                pl.BlockSpec((ts, ds), lambda i: (0, 0)),            # resident table
            ],
            out_specs=(
                pl.BlockSpec((tile, npack * dim_node), lambda i: (i, 0)),
                pl.BlockSpec((s, ds), lambda i: (0, 0)),             # resident out
            ),
        ),
        # "arbitrary": the resident state output is only written at step 0, which
        # must not be split across cores; the lookup is cheap/mem-light anyway.
        compiler_params=pltpu.CompilerParams(
            dimension_semantics=("arbitrary",),
        ),
    )(nidx, node_tbl_bd, sidx, state_table)

    node_feat = packed_out.reshape(n_pad, dim_node)[:n]
    return node_feat, state_feat


def node_lookup(node_idx, node_tbl_bd, npack, dim_node, *, max_tile_rows=2048):
    assert max_tile_rows % 8 == 0
    n = node_idx.shape[0]
    n_rows = pl.cdiv(n, npack)
    n_pad = n_rows * npack
    nidx = node_idx.astype(jnp.int32)
    if n_pad != n:
        nidx = jnp.pad(nidx, (0, n_pad - n))
    nidx = nidx.reshape(n_rows, npack)

    tile = n_rows if n_rows <= max_tile_rows else max_tile_rows
    grid = pl.cdiv(n_rows, tile)

    packed_out = pl.pallas_call(
        _node_lookup_kernel,
        out_shape=jax.ShapeDtypeStruct((n_rows, npack * dim_node), jnp.float32),
        grid_spec=pltpu.PrefetchScalarGridSpec(
            num_scalar_prefetch=0,
            grid=(grid,),
            in_specs=[
                pl.BlockSpec((tile, npack), lambda i: (i, 0)),
                pl.BlockSpec(node_tbl_bd.shape, lambda i: (0, 0)),
            ],
            out_specs=pl.BlockSpec((tile, npack * dim_node), lambda i: (i, 0)),
        ),
        compiler_params=pltpu.CompilerParams(
            dimension_semantics=("parallel",),
        ),
    )(nidx, node_tbl_bd)
    return packed_out.reshape(n_pad, dim_node)[:n]


class EmbeddingBlockPallas:
    """JAX/Pallas port of diep EmbeddingBlock (forward only)."""

    def __init__(
        self,
        degree_rbf: int,
        dim_node_embedding: int,
        dim_edge_embedding: int,
        ntypes_node: int,
        include_state: bool,
        ntypes_state: int,
        dim_state_embedding: int,
        key,
        edge_feat_dtype=jnp.bfloat16,   # bf16 edge features halve HBM write bytes
    ):
        self.include_state = include_state
        self.ntypes_state = ntypes_state
        self.dim_node_embedding = dim_node_embedding
        self.dim_edge_embedding = dim_edge_embedding
        self.ntypes_node = ntypes_node
        self.dim_state_embedding = dim_state_embedding
        self.degree_rbf = degree_rbf
        self.edge_feat_dtype = edge_feat_dtype

        # lane-dense packing factors (fall back to 1 if 128 isn't divisible)
        self.edge_pack = (128 // degree_rbf
                          if degree_rbf <= 128 and 128 % degree_rbf == 0 else 1)
        self.node_pack = (128 // dim_node_embedding
                          if dim_node_embedding <= 128 and 128 % dim_node_embedding == 0
                          else 1)

        k_node, k_state, k_w, k_b = jax.random.split(key, 4)
        # nn.Embedding(ntypes_node, dim_node_embedding) ~ N(0, 1)
        self.node_table = jax.random.normal(
            k_node, (ntypes_node, dim_node_embedding), jnp.float32)
        # nn.Embedding(ntypes_state, dim_state_embedding)
        self.state_table = jax.random.normal(
            k_state, (ntypes_state, dim_state_embedding), jnp.float32)
        # MLP([degree_rbf, dim_edge_embedding]) -> Linear(R, D) with bias, activated
        bound = 1.0 / (degree_rbf ** 0.5)
        self.edge_w = jax.random.uniform(
            k_w, (degree_rbf, dim_edge_embedding), jnp.float32, -bound, bound)
        self.edge_b = jax.random.uniform(
            k_b, (dim_edge_embedding,), jnp.float32, -bound, bound)

        # Precompute (once) the lane-dense packed edge-MLP parameters:
        #   block-diag W: [pack*R, pack*D] (pack copies on the diagonal, 128 KiB)
        #   tiled bias  : [1, pack*D]
        eye_e = jnp.eye(self.edge_pack, dtype=jnp.float32)
        self.edge_w_bd = jnp.einsum("pq,rd->prqd", eye_e, self.edge_w).reshape(
            self.edge_pack * degree_rbf, self.edge_pack * dim_edge_embedding)
        self.edge_b_bd = jnp.tile(self.edge_b, self.edge_pack).reshape(
            1, self.edge_pack * dim_edge_embedding)

        # Block-diag node table for the lane-dense lookup; slot-major one-hot
        # column layout (c = p*T + t) -> row index p*T + t.
        eye_n = jnp.eye(self.node_pack, dtype=jnp.float32)
        self.node_tbl_bd = jnp.einsum("pq,td->ptqd", eye_n, self.node_table).reshape(
            self.node_pack * ntypes_node, self.node_pack * dim_node_embedding)

    def __call__(self, node_attr, edge_attr, state_attr):
        # edge: dim_edge_embedding is not None -> MLP with activate_last=True
        edge_feat = edge_mlp_packed(
            edge_attr, self.edge_w_bd, self.edge_b_bd, self.dim_edge_embedding,
            pack=self.edge_pack, out_dtype=self.edge_feat_dtype)
        if self.include_state:
            node_feat, state_feat = node_state_lookup(
                node_attr, self.node_tbl_bd, self.node_pack,
                self.dim_node_embedding, state_attr, self.state_table)
        else:
            node_feat = node_lookup(node_attr, self.node_tbl_bd, self.node_pack,
                                    self.dim_node_embedding)
            state_feat = None
        return node_feat, edge_feat, state_feat


# ----------------------------------------------------------------------------
# Pure-JAX reference for sanity check
# ----------------------------------------------------------------------------
def _reference(block, node_attr, edge_attr, state_attr):
    node_feat = block.node_table[node_attr]
    y = edge_attr.astype(jnp.float32) @ block.edge_w + block.edge_b
    edge_feat = jax.nn.softplus(y)
    state_feat = block.state_table[state_attr]
    return node_feat, edge_feat, state_feat


if __name__ == "__main__":
    key = jax.random.PRNGKey(0)
    k_params, k_node, k_edge, k_state = jax.random.split(key, 4)

    # module hyper-params
    degree_rbf = 16
    dim_node_embedding = 32
    dim_edge_embedding = 32
    ntypes_node = 8
    ntypes_state = 4
    dim_state_embedding = 16

    block = EmbeddingBlockPallas(
        degree_rbf=degree_rbf,
        dim_node_embedding=dim_node_embedding,
        dim_edge_embedding=dim_edge_embedding,
        ntypes_node=ntypes_node,
        include_state=True,
        ntypes_state=ntypes_state,
        dim_state_embedding=dim_state_embedding,
        key=k_params,
    )

    # example graph: 19 nodes, 100 edges, 1 state label
    # (deliberately not multiples of the packing factors to exercise pad/trim)
    num_nodes, num_edges = 19, 100
    node_attr = jax.random.randint(k_node, (num_nodes,), 0, ntypes_node, jnp.int32)
    # feed bf16 edge attributes (halves the HBM read); kernel math stays f32
    edge_attr = jax.random.normal(
        k_edge, (num_edges, degree_rbf), jnp.float32).astype(jnp.bfloat16)
    state_attr = jax.random.randint(k_state, (1,), 0, ntypes_state, jnp.int32)

    node_feat, edge_feat, state_feat = block(node_attr, edge_attr, state_attr)
    jax.block_until_ready((node_feat, edge_feat, state_feat))

    # verify against pure-JAX reference
    ref_node, ref_edge, ref_state = _reference(block, node_attr, edge_attr, state_attr)
    assert node_feat.shape == (num_nodes, dim_node_embedding)
    assert edge_feat.shape == (num_edges, dim_edge_embedding)
    assert state_feat.shape == (1, dim_state_embedding)
    assert edge_feat.dtype == jnp.bfloat16
    assert jnp.allclose(node_feat, ref_node, atol=1e-5)
    assert jnp.allclose(state_feat, ref_state, atol=1e-5)
    # edge features are emitted in bf16 -> looser tolerance vs the f32 reference
    assert jnp.allclose(edge_feat.astype(jnp.float32), ref_edge,
                        atol=5e-2, rtol=5e-2)

    print("KERNEL_OK")
</pallas_src>

<mosaic_0001>
module attributes {stable_mosaic.version = 11 : i64} {
  func.func @_edge_mlp_packed_kernel(%arg0: i32, %arg1: memref<13x128xbf16, #tpu.memory_space<vmem>>, %arg2: memref<128x256xf32, #tpu.memory_space<vmem>>, %arg3: memref<1x256xf32, #tpu.memory_space<vmem>>, %arg4: memref<13x256xbf16, #tpu.memory_space<vmem>>) attributes {dimension_semantics = [#tpu.dimension_semantics<parallel>], iteration_bounds = array<i64: 1>, scalar_prefetch = 0 : i64, scratch_operands = 0 : i64, tpu.core_type = #tpu.core_type<tc>, window_params = [{transform_indices = @transform_0, window_bounds = array<i64: 13, 128>}, {pipeline_mode = #tpu.pipeline_mode<synchronous>, transform_indices = @transform_1, window_bounds = array<i64: 128, 256>}, {pipeline_mode = #tpu.pipeline_mode<synchronous>, transform_indices = @transform_2, window_bounds = array<i64: 1, 256>}, {transform_indices = @transform_3, window_bounds = array<i64: 13, 256>}]} {
    %c0 = arith.constant 0 : index
    %c0_0 = arith.constant 0 : index
    %0 = vector.load %arg1[%c0, %c0_0] : memref<13x128xbf16, #tpu.memory_space<vmem>>, vector<13x128xbf16>
    %1 = arith.extf %0 : vector<13x128xbf16> to vector<13x128xf32>
    %c0_1 = arith.constant 0 : index
    %c0_2 = arith.constant 0 : index
    %2 = vector.load %arg2[%c0_1, %c0_2] : memref<128x256xf32, #tpu.memory_space<vmem>>, vector<128x256xf32>
    %cst = arith.constant dense<0.000000e+00> : vector<13x256xf32>
    %3 = tpu.matmul %1, %2, %cst {dimension_numbers = #tpu.dot_dimension_numbers<[1], [0], [0], [1], [0, 0, 1, 1], [], []>} : vector<13x128xf32>, vector<128x256xf32>, vector<13x256xf32> -> vector<13x256xf32>
    %c0_3 = arith.constant 0 : index
    %c0_4 = arith.constant 0 : index
    %4 = vector.load %arg3[%c0_3, %c0_4] : memref<1x256xf32, #tpu.memory_space<vmem>>, vector<1x256xf32>
    %5 = vector.broadcast %4 : vector<1x256xf32> to vector<13x256xf32>
    %6 = arith.addf %3, %5 : vector<13x256xf32>
    %cst_5 = arith.constant 0.000000e+00 : f32
    %7 = vector.broadcast %cst_5 : f32 to vector<13x256xf32>
    %8 = arith.maximumf %6, %7 : vector<13x256xf32>
    %9 = math.absf %6 : vector<13x256xf32>
    %cst_6 = arith.constant 0.000000e+00 : f32
    %10 = vector.broadcast %cst_6 : f32 to vector<13x256xf32>
    %11 = arith.subf %10, %9 : vector<13x256xf32>
    %12 = math.exp %11 : vector<13x256xf32>
    %13 = math.log1p %12 : vector<13x256xf32>
    %14 = arith.addf %8, %13 : vector<13x256xf32>
    %15 = arith.truncf %14 : vector<13x256xf32> to vector<13x256xbf16>
    %c0_7 = arith.constant 0 : index
    %c0_8 = arith.constant 0 : index
    %16 = vector.load %arg4[%c0_7, %c0_8] : memref<13x256xbf16, #tpu.memory_space<vmem>>, vector<13x256xbf16>
    tpu.vector_store %arg4[%c0_7, %c0_8], %15 {strides = array<i32>} : memref<13x256xbf16, #tpu.memory_space<vmem>>, vector<13x256xbf16>,
    return
  }
  func.func @transform_0(%arg0: i32) -> (i32, i32) {
    %c0_i32 = arith.constant 0 : i32
    %c0_i32_0 = arith.constant 0 : i32
    return %arg0, %c0_i32 : i32, i32
  }
  func.func @transform_1(%arg0: i32) -> (i32, i32) {
    %c0_i32 = arith.constant 0 : i32
    %c0_i32_0 = arith.constant 0 : i32
    %c0_i32_1 = arith.constant 0 : i32
    return %c0_i32, %c0_i32_0 : i32, i32
  }
  func.func @transform_2(%arg0: i32) -> (i32, i32) {
    %c0_i32 = arith.constant 0 : i32
    %c0_i32_0 = arith.constant 0 : i32
    %c0_i32_1 = arith.constant 0 : i32
    return %c0_i32, %c0_i32_0 : i32, i32
  }
  func.func @transform_3(%arg0: i32) -> (i32, i32) {
    %c0_i32 = arith.constant 0 : i32
    %c0_i32_0 = arith.constant 0 : i32
    return %arg0, %c0_i32 : i32, i32
  }
}

</mosaic_0001>

<llo_original>
// kernel: tpu_custom_call.1
$region0: #{tpu_custom_call.1}
  #allocation0 [shape = 'u32[]', space=smem, size = 0x4, offset = 0x4, fixed_abs, tag = 'smem constant byte address 0x4 - core index']
  #allocation1 [shape = 'u32[144,128]{1,0:T(1,128)}', space=vmem, size = 0x12000, scoped, tag = 'internal scratch']
  %s0 = inlined_call_operand.hbm [shape: bf16[13,128], index: 0, kind: input, shape index: {}]
  %s1 = inlined_call_operand.hbm [shape: f32[128,256], index: 1, kind: input, shape index: {}]
  %s2 = inlined_call_operand.vmem [shape: f32[1,256], index: 2, kind: input, shape index: {}]
  %s3 = inlined_call_operand.hbm [shape: bf16[13,256], index: 3, kind: output, shape index: {}]
  %s4 = sld [smem:[#allocation0]]
  $region30: #{tpu_custom_call.1} parent=0
    _
  %s6 = ssub.s32 1, %s4
  %s7 = scalar_select 0, %s6, %s4
  $region1: #{tpu_custom_call.1} parent=0
    #allocation2 [shape = 'u8[4096]{0}', space=vmem, size = 0x1000, scoped, tag = 'input window, operand 0, single buffered']
    #allocation3 [shape = 's32[1]{0}', space=sflag, size = 0x4, scoped, tag = 'scoped memory for tpu_custom_call.1']
    #allocation4 [shape = 's32[1]{0}', space=sflag, size = 0x4, scoped, tag = 'scoped memory for tpu_custom_call.1']
    #allocation5 [shape = 'u8[131072]{0}', space=vmem, size = 0x20000, scoped, tag = 'input window, operand 1, single buffered']
    #allocation6 [shape = 's32[1]{0}', space=sflag, size = 0x4, scoped, tag = 'scoped memory for tpu_custom_call.1']
    #allocation7 [shape = 'u8[8192]{0}', space=vmem, size = 0x2000, scoped, tag = 'output window, operand 0, single buffered']
    %8 = vsyncpa [#allocation3], 0
    %9 = vsyncpa [#allocation6], 0
    %10 = vsyncpa [#allocation4], 0
    // Predicated region
    $region2: #{tpu_custom_call.1} parent=1 // pred_check
      _
    $region3: #{tpu_custom_call.1} parent=1 // pred_check_branch
      %12 = sbr.rel (0) target = $region5
    $region4: #{tpu_custom_call.1} parent=1 // pred_region
      %s14 = ssub.s32 128, 128
      %15 = vsyncadd [#allocation3], %s14
      %s16 = sshll.u32 [#allocation2], 4
      %s17 = int_to_ptr.vmem [resolvable:$true] %s16
      %22 = dma.hbm_to_vmem [thread:$0]  %s0, 128, %s17, [#allocation3], 64, 64, 4
    $region5: #{tpu_custom_call.1} parent=1 // pred_fallthru
      _
    // Predicated region
    $region6: #{tpu_custom_call.1} parent=1 // pred_check
      _
    $region7: #{tpu_custom_call.1} parent=1 // pred_check_branch
      %24 = sbr.rel (0) target = $region9
    $region8: #{tpu_custom_call.1} parent=1 // pred_region
      %s26 = ssub.s32 4096, 4096
      %27 = vsyncadd [#allocation6], %s26
      %s28 = sshll.u32 [#allocation5], 4
      %s29 = int_to_ptr.vmem [resolvable:$true] %s28
      %34 = dma.hbm_to_vmem [thread:$0]  %s1, 4096, %s29, [#allocation6], 256, 256, 16
    $region9: #{tpu_custom_call.1} parent=1 // pred_fallthru
      _
    // Predicated region
    $region10: #{tpu_custom_call.1} parent=1 // pred_check
      _
    $region11: #{tpu_custom_call.1} parent=1 // pred_check_branch
      %36 = sbr.rel (0) target = $region13
    $region12: #{tpu_custom_call.1} parent=1 // pred_region
      _
    $region13: #{tpu_custom_call.1} parent=1 // pred_fallthru
      _
    // Predicated region
    $region14: #{tpu_custom_call.1} parent=1 // pred_check
      _
    $region15: #{tpu_custom_call.1} parent=1 // pred_check_branch
      %38 = sbr.rel (0) target = $region17
    $region16: #{tpu_custom_call.1} parent=1 // pred_region
      %39 = dma.done [#allocation3], 128
    $region17: #{tpu_custom_call.1} parent=1 // pred_fallthru
      _
    // Predicated region
    $region18: #{tpu_custom_call.1} parent=1 // pred_check
      _
    $region19: #{tpu_custom_call.1} parent=1 // pred_check_branch
      %41 = sbr.rel (0) target = $region21
    $region20: #{tpu_custom_call.1} parent=1 // pred_region
      %42 = dma.done [#allocation6], 4096
    $region21: #{tpu_custom_call.1} parent=1 // pred_fallthru
      _
    %v43 = vld [vmem:[#allocation2] sm:$0xf]
    %v44 = vld [vmem:[#allocation2 + $0x4] sm:$0x7]
    %v45 = vunpack.c.l.bf16 %v43
    %v46 = vunpack.c.l.bf16 %v44
    %v47 = vld [vmem:[#allocation5] sm:$0xff]
    %v48 = vld [vmem:[#allocation5 + $0x8] sm:$0xff]
    %v49 = vld [vmem:[#allocation5 + $0x10] sm:$0xff]
    %v50 = vld [vmem:[#allocation5 + $0x18] sm:$0xff]
    %v51 = vld [vmem:[#allocation5 + $0x20] sm:$0xff]
    %v52 = vld [vmem:[#allocation5 + $0x28] sm:$0xff]
    %v53 = vld [vmem:[#allocation5 + $0x30] sm:$0xff]
    %v54 = vld [vmem:[#allocation5 + $0x38] sm:$0xff]
    %v55 = vld [vmem:[#allocation5 + $0x40] sm:$0xff]
    %v56 = vld [vmem:[#allocation5 + $0x48] sm:$0xff]
    %v57 = vld [vmem:[#allocation5 + $0x50] sm:$0xff]
    %v58 = vld [vmem:[#allocation5 + $0x58] sm:$0xff]
    %v59 = vld [vmem:[#allocation5 + $0x60] sm:$0xff]
    %v60 = vld [vmem:[#allocation5 + $0x68] sm:$0xff]
    %v61 = vld [vmem:[#allocation5 + $0x70] sm:$0xff]
    %v62 = vld [vmem:[#allocation5 + $0x78] sm:$0xff]
    %v63 = vld [vmem:[#allocation5 + $0x80] sm:$0xff]
    %v64 = vld [vmem:[#allocation5 + $0x88] sm:$0xff]
    %v65 = vld [vmem:[#allocation5 + $0x90] sm:$0xff]
    %v66 = vld [vmem:[#allocation5 + $0x98] sm:$0xff]
    %v67 = vld [vmem:[#allocation5 + $0xa0] sm:$0xff]
    %v68 = vld [vmem:[#allocation5 + $0xa8] sm:$0xff]
    %v69 = vld [vmem:[#allocation5 + $0xb0] sm:$0xff]
    %v70 = vld [vmem:[#allocation5 + $0xb8] sm:$0xff]
    %v71 = vld [vmem:[#allocation5 + $0xc0] sm:$0xff]
    %v72 = vld [vmem:[#allocation5 + $0xc8] sm:$0xff]
    %v73 = vld [vmem:[#allocation5 + $0xd0] sm:$0xff]
    %v74 = vld [vmem:[#allocation5 + $0xd8] sm:$0xff]
    %v75 = vld [vmem:[#allocation5 + $0xe0] sm:$0xff]
    %v76 = vld [vmem:[#allocation5 + $0xe8] sm:$0xff]
    %v77 = vld [vmem:[#allocation5 + $0xf0] sm:$0xff]
    %v78 = vld [vmem:[#allocation5 + $0xf8] sm:$0xff]
    %v79 = vld [vmem:[%s2] sm:$0x3]
    %v81 = vlaneseq
    %v82 = vshrl.u32 %v81, 7
    %v83 = vsub.s32 0, %v82
    %v84 = vrot.slane %v79, %v83
    %v85 = vlaneseq
    %v86 = vshrl.u32 %v85, 7
    %v87 = vsub.s32 1, %v86
    %v88 = vrot.slane %v79, %v87
    %91 = vmatprep.subr.mxu0 %v78
    %92 = vmatpush1.msra.mxu0 %v77
    %93 = vmatprep.subr.mxu0 %v76
    %94 = vmatpush1.msra.mxu0 %v75
    %95 = vmatprep.subr.mxu0 %v74
    %96 = vmatpush1.msra.mxu0 %v73
    %97 = vmatprep.subr.mxu0 %v72
    %98 = vmatpush1.msra.mxu0 %v71
    %99 = vmatprep.subr.mxu0 %v70
    %100 = vmatpush1.msra.mxu0 %v69
    %101 = vmatprep.subr.mxu0 %v68
    %102 = vmatpush1.msra.mxu0 %v67
    %103 = vmatprep.subr.mxu0 %v66
    %104 = vmatpush1.msra.mxu0 %v65
    %105 = vmatprep.subr.mxu0 %v64
    %106 = vmatpush1.msra.mxu0 %v63
    %107 = vmatprep.subr.mxu0 %v62
    %108 = vmatpush1.msra.mxu0 %v61
    %109 = vmatprep.subr.mxu0 %v60
    %110 = vmatpush1.msra.mxu0 %v59
    %111 = vmatprep.subr.mxu0 %v58
    %112 = vmatpush1.msra.mxu0 %v57
    %113 = vmatprep.subr.mxu0 %v56
    %114 = vmatpush1.msra.mxu0 %v55
    %115 = vmatprep.subr.mxu0 %v54
    %116 = vmatpush1.msra.mxu0 %v53
    %117 = vmatprep.subr.mxu0 %v52
    %118 = vmatpush1.msra.mxu0 %v51
    %119 = vmatprep.subr.mxu0 %v50
    %120 = vmatpush1.msra.mxu0 %v49
    %121 = vmatprep.subr.mxu0 %v48
    %122 = vmatpush1.msra.mxu0 %v47
    %123 = vmatprep.subr.mxu0 0.0
    %124 = vmatpush2.msra.mxu0 0.0
    %125 = vmatprep.subr.mxu0 0.0
    %126 = vmatpush2.msra.mxu0 0.0
    %127 = vmatprep.subr.mxu0 0.0
    %128 = vmatpush2.msra.mxu0 0.0
    %129 = vmatprep.subr.mxu0 0.0
    %130 = vmatpush2.msra.mxu0 0.0
    %131 = vmatprep.subr.mxu0 0.0
    %132 = vmatpush2.msra.mxu0 0.0
    %133 = vmatprep.subr.mxu0 0.0
    %134 = vmatpush2.msra.mxu0 0.0
    %135 = vmatprep.subr.mxu0 0.0
    %136 = vmatpush2.msra.mxu0 0.0
    %137 = vmatprep.subr.mxu0 0.0
    %138 = vmatpush2.msra.mxu0 0.0
    %139 = vmatprep.subr.mxu0 0.0
    %140 = vmatpush2.msra.mxu0 0.0
    %141 = vmatprep.subr.mxu0 0.0
    %142 = vmatpush2.msra.mxu0 0.0
    %143 = vmatprep.subr.mxu0 0.0
    %144 = vmatpush2.msra.mxu0 0.0
    %145 = vmatprep.subr.mxu0 0.0
    %146 = vmatpush2.msra.mxu0 0.0
    %147 = vmatprep.subr.mxu0 0.0
    %148 = vmatpush2.msra.mxu0 0.0
    %149 = vmatprep.subr.mxu0 0.0
    %150 = vmatpush2.msra.mxu0 0.0
    %151 = vmatprep.subr.mxu0 0.0
    %152 = vmatpush2.msra.mxu0 0.0
    %153 = vmatprep.subr.mxu0 0.0
    %154 = vmatpush2.msra.mxu0 0.0
    %155 = vmatprep.mubr.f32.mxu0 0.0
    %156 = vmatmul.mubr.f32.gmra.mxu0 %v45
    %v157 = vpop.f32.mrf.mxu0
    %v158 = vadd.f32 %v84, %v157
    %v159 = vpop.f32.mrf.mxu0
    %v160 = vadd.f32 %v88, %v159
    %161 = vmatprep.mubr.f32.mxu0 0.0
    %162 = vmatmul.mubr.f32.gmra.mxu0 %v46
    %v163 = vpop.f32.mrf.mxu0
    %v164 = vadd.f32 %v84, %v163
    %v165 = vpop.f32.mrf.mxu0
    %v166 = vadd.f32 %v88, %v165
    %167 = vdwg.mxu0
    %v168 = vmax.f32 %v158, 0.0
    %v169 = vmax.f32 %v160, 0.0
    %v170 = vmax.f32 %v164, 0.0
    %v171 = vmax.f32 %v166, 0.0
    %v172 = vand.u32 2147483647, %v158
    %v173 = vand.u32 2147483647, %v160
    %v174 = vand.u32 2147483647, %v164
    %v175 = vand.u32 2147483647, %v166
    %v176 = vsub.f32 0.0, %v172
    %v177 = vsub.f32 0.0, %v173
    %v178 = vsub.f32 0.0, %v174
    %v179 = vsub.f32 0.0, %v175
    %v180 = vmul.f32 %v176, 1.442695
    %v181 = vpow.pop %v180
    %v182 = vmul.f32 %v177, 1.442695
    %v183 = vpow.pop %v182
    %v184 = vmul.f32 %v178, 1.442695
    %v185 = vpow.pop %v184
    %v186 = vmul.f32 %v179, 1.442695
    %v187 = vpow.pop %v186
    %v188 = vadd.f32 %v181, 1.0
    %v189 = vlog2.pop %v188
    %v190 = vmul.f32 %v189, 0.6931472
    %v191 = vmul.f32 -0.5, %v181
    %v192 = vadd.f32 %v191, 1.0
    %v193 = vmul.f32 %v192, %v181
    %v194 = vand.u32 2147483647, %v181
    %vm195 = vcmp.lt.f32.partialorder %v194, 0.0004427343
    %v196 = vsel %vm195, %v193, %v190
    %v197 = vadd.f32 %v183, 1.0
    %v198 = vlog2.pop %v197
    %v199 = vmul.f32 %v198, 0.6931472
    %v200 = vmul.f32 -0.5, %v183
    %v201 = vadd.f32 %v200, 1.0
    %v202 = vmul.f32 %v201, %v183
    %v203 = vand.u32 2147483647, %v183
    %vm204 = vcmp.lt.f32.partialorder %v203, 0.0004427343
    %v205 = vsel %vm204, %v202, %v199
    %v206 = vadd.f32 %v185, 1.0
    %v207 = vlog2.pop %v206
    %v208 = vmul.f32 %v207, 0.6931472
    %v209 = vmul.f32 -0.5, %v185
    %v210 = vadd.f32 %v209, 1.0
    %v211 = vmul.f32 %v210, %v185
    %v212 = vand.u32 2147483647, %v185
    %vm213 = vcmp.lt.f32.partialorder %v212, 0.0004427343
    %v214 = vsel %vm213, %v211, %v208
    %v215 = vadd.f32 %v187, 1.0
    %v216 = vlog2.pop %v215
    %v217 = vmul.f32 %v216, 0.6931472
    %v218 = vmul.f32 -0.5, %v187
    %v219 = vadd.f32 %v218, 1.0
    %v220 = vmul.f32 %v219, %v187
    %v221 = vand.u32 2147483647, %v187
    %vm222 = vcmp.lt.f32.partialorder %v221, 0.0004427343
    %v223 = vsel %vm222, %v220, %v217
    %v224 = vadd.f32 %v168, %v196
    %v225 = vadd.f32 %v169, %v205
    %v226 = vadd.f32 %v170, %v214
    %v227 = vadd.f32 %v171, %v223
    %v228 = vpack.c.bf16 %v226, %v224
    %v229 = vpack.c.bf16 %v227, %v225
    %v232 = vunpack.c.l.b16 %v228
    %v233 = vunpack.c.l.b16 %v229
    %v234 = vunpack.c.h.b16 %v228
    %v235 = vunpack.c.h.b16 %v229
    %v236 = vpack.c.b16 %v233, %v232
    %v237 = vpack.c.b16 %v235, %v234
    %240 = vst [vmem:[#allocation7] sm:$0xff] %v236
    %vm241 = vcmask 1042432
    %vm242 = vsmask.f32 2304
    %vm243 = vmand %vm241, %vm242
    %vm244 = vcmask 1046532
    %vm245 = vsmask.f32 6400
    %vm246 = vmand %vm244, %vm245
    %vm247 = vmor %vm246, %vm243
    %v248 = vld [vmem:[#allocation7 + $0x8] sm:$0x77]
    %v249 = vsel %vm247, %v237, %v248
    %250 = vst [vmem:[#allocation7 + $0x8] sm:$0x77] %v249
    // Predicated region
    $region22: #{tpu_custom_call.1} parent=1 // pred_check
      _
    $region23: #{tpu_custom_call.1} parent=1 // pred_check_branch
      %252 = sbr.rel (0) target = $region25
    $region24: #{tpu_custom_call.1} parent=1 // pred_region
      %s254 = ssub.s32 256, 256
      %255 = vsyncadd [#allocation4], %s254
      %s256 = sshll.u32 [#allocation7], 4
      %s257 = int_to_ptr.vmem [resolvable:$true] %s256
      %262 = dma.vmem_to_hbm [thread:$0]  %s257, 256, %s3, [#allocation4], 128, 128, 8
    $region25: #{tpu_custom_call.1} parent=1 // pred_fallthru
      _
    // Predicated region
    $region26: #{tpu_custom_call.1} parent=1 // pred_check
      _
    $region27: #{tpu_custom_call.1} parent=1 // pred_check_branch
      %264 = sbr.rel (0) target = $region29
    $region28: #{tpu_custom_call.1} parent=1 // pred_region
      %265 = dma.done [#allocation4], 256
    $region29: #{tpu_custom_call.1} parent=1 // pred_fallthru
      _
    %266 = vsyncpa [#allocation3], 1
    %267 = vsyncpa [#allocation6], 1
    %268 = vsyncpa [#allocation4], 1

</llo_original>
